<compile_context>
chip_gen: v7x
topology: tpu7x:2x2x1
jax: 0.10.0
libtpu: 0.0.40
codegen_flags: <defaults>
</compile_context>

<pallas_src>
import jax
import jax.numpy as jnp
from jax.experimental import pallas as pl
from jax.experimental.pallas import tpu as pltpu

K_IN = 784          # 1*28*28 flattened features
N_OUT = 10          # logits
N_PAD = 128         # lane-padded width of the resident W^T (output is NOT padded)
TB_CAP = 1024       # ~3.2 MB f32 x-tile already saturates HBM roofline
TARGET_TILES = 8    # aim for >= 8 grid steps so v7x dual-TC sharding balances


def linear_kernel(x_ref, wt_ref, o_ref):
    # x_ref:  (TB, 784)   activation tile (double-buffered by the pipeline)
    # wt_ref: (784, 128)  VMEM-resident zero-padded W^T (constant index_map)
    # o_ref:  (TB, 10)    unpadded logits tile -> no post-kernel slice pass
    acc = jnp.dot(x_ref[...], wt_ref[...], preferred_element_type=jnp.float32)
    o_ref[...] = acc[:, :N_OUT].astype(o_ref.dtype)


def prepare_weight(weight, dtype=jnp.float32):
    """(10, 784) torch-layout weight -> (784, 128) lane-padded W^T.

    Build once outside the hot path (zero columns 10..127 leave logits exact).
    """
    wt = jnp.zeros((K_IN, N_PAD), dtype=dtype)
    return wt.at[:, :N_OUT].set(weight.T.astype(dtype))


def _pick_batch_tile(n, align):
    """Batch tile: capped at TB_CAP rows, rounded to sublane packing, and small
    enough to give >= TARGET_TILES grid steps for megacore load balance."""
    if n <= align:
        return n                                  # single full block (legal for any n)
    tb = -(-n // TARGET_TILES)                    # cdiv(n, TARGET_TILES)
    tb = -(-tb // align) * align                  # round up to sublane alignment
    return min(tb, TB_CAP)


def boris_net_forward(x, wt_pad, *, stream_bf16=False):
    """x: (N, ...) with prod(...)==784; wt_pad from prepare_weight(). Returns (N, 10) f32."""
    n = x.shape[0]
    x_flat = x.reshape(n, K_IN)                   # torch .view(x.size(0), -1) order
    if stream_bf16:
        # Optional ~2x HBM-read saving; ~1e-3 relative error, so opt-in only.
        x_flat = x_flat.astype(jnp.bfloat16)

    itemsize = x_flat.dtype.itemsize
    align = 16 if itemsize == 2 else 8            # sublane packing (bf16 packs 2/row-pair)
    tb = _pick_batch_tile(n, align)
    grid = (pl.cdiv(n, tb),)

    # VMEM need: x double-buffer + out double-buffer (lanes pad to 128) + weight buffers.
    vmem_need = (2 * tb * K_IN * itemsize
                 + 2 * tb * 128 * 4
                 + 2 * K_IN * N_PAD * wt_pad.dtype.itemsize)
    vmem_limit = int(min(max(vmem_need + (8 << 20), 16 << 20), 60 << 20))

    cost = pl.CostEstimate(
        flops=2 * n * K_IN * N_OUT,
        transcendentals=0,
        bytes_accessed=(n * K_IN * itemsize            # x read
                        + n * N_OUT * 4                # logits write (unpadded)
                        + K_IN * N_PAD * wt_pad.dtype.itemsize),
    )

    return pl.pallas_call(
        linear_kernel,
        out_shape=jax.ShapeDtypeStruct((n, N_OUT), jnp.float32),
        grid_spec=pltpu.PrefetchScalarGridSpec(
            num_scalar_prefetch=0,
            grid=grid,
            in_specs=[
                # Activation: tiled along batch, full K extent.
                pl.BlockSpec((tb, K_IN), lambda i: (i, 0)),
                # Weight: constant index_map -> DMA'd once, stays VMEM-resident.
                # TODO(synk): pipeline_mode=pl.Buffered(1) would drop the unused
                # second weight buffer (~0.4 MB); left at default for safety.
                pl.BlockSpec((K_IN, N_PAD), lambda i: (0, 0)),
            ],
            # Unpadded (tb, 10) output block: last dim equals full array dim -> legal.
            out_specs=pl.BlockSpec((tb, N_OUT), lambda i: (i, 0)),
        ),
        compiler_params=pltpu.CompilerParams(
            dimension_semantics=("parallel",),     # shard batch tiles across TCs (v7x)
            vmem_limit_bytes=vmem_limit,
        ),
        cost_estimate=cost,
    )(x_flat, wt_pad)


if __name__ == "__main__":
    key = jax.random.PRNGKey(0)
    kx, kw = jax.random.split(key)

    # MNIST-like input implied by the 784-feature Linear: (batch, 1, 28, 28)
    batch = 2
    x = jax.random.normal(kx, (batch, 1, 28, 28), dtype=jnp.float32)

    # Deterministic init mimicking nn.Linear default: U(-1/sqrt(784), 1/sqrt(784))
    bound = 1.0 / jnp.sqrt(784.0)
    weight = jax.random.uniform(
        kw, (10, 784), minval=-bound, maxval=bound, dtype=jnp.float32
    )

    wt_pad = prepare_weight(weight)            # built once, outside the hot path
    y = boris_net_forward(x, wt_pad)
    y = jax.block_until_ready(y)

    # Correctness check against plain JAX reference.
    y_ref = x.reshape(batch, -1) @ weight.T
    assert y.shape == (batch, 10)
    assert jnp.allclose(y, y_ref, atol=1e-5, rtol=1e-5)

    print("KERNEL_OK")
</pallas_src>

<mosaic_0001>
module attributes {stable_mosaic.version = 11 : i64} {
  func.func @linear_kernel(%arg0: i32, %arg1: memref<2x784xf32, #tpu.memory_space<vmem>>, %arg2: memref<784x128xf32, #tpu.memory_space<vmem>>, %arg3: memref<2x10xf32, #tpu.memory_space<vmem>>) attributes {dimension_semantics = [#tpu.dimension_semantics<parallel>], iteration_bounds = array<i64: 1>, scalar_prefetch = 0 : i64, scratch_operands = 0 : i64, tpu.core_type = #tpu.core_type<tc>, window_params = [{transform_indices = @transform_0, window_bounds = array<i64: 2, 784>}, {pipeline_mode = #tpu.pipeline_mode<synchronous>, transform_indices = @transform_1, window_bounds = array<i64: 784, 128>}, {transform_indices = @transform_2, window_bounds = array<i64: 2, 10>}]} {
    %c0 = arith.constant 0 : index
    %c0_0 = arith.constant 0 : index
    %0 = vector.load %arg1[%c0, %c0_0] : memref<2x784xf32, #tpu.memory_space<vmem>>, vector<2x784xf32>
    %c0_1 = arith.constant 0 : index
    %c0_2 = arith.constant 0 : index
    %1 = vector.load %arg2[%c0_1, %c0_2] : memref<784x128xf32, #tpu.memory_space<vmem>>, vector<784x128xf32>
    %cst = arith.constant dense<0.000000e+00> : vector<2x128xf32>
    %2 = tpu.matmul %0, %1, %cst {dimension_numbers = #tpu.dot_dimension_numbers<[1], [0], [0], [1], [0, 0, 1, 1], [], []>} : vector<2x784xf32>, vector<784x128xf32>, vector<2x128xf32> -> vector<2x128xf32>
    %3 = vector.extract_strided_slice %2 {offsets = [0, 0], sizes = [2, 10], strides = [1, 1]} : vector<2x128xf32> to vector<2x10xf32>
    %c0_3 = arith.constant 0 : index
    %c0_4 = arith.constant 0 : index
    %4 = vector.load %arg3[%c0_3, %c0_4] : memref<2x10xf32, #tpu.memory_space<vmem>>, vector<2x10xf32>
    tpu.vector_store %arg3[%c0_3, %c0_4], %3 {strides = array<i32>} : memref<2x10xf32, #tpu.memory_space<vmem>>, vector<2x10xf32>,
    return
  }
  func.func @transform_0(%arg0: i32) -> (i32, i32) {
    %c0_i32 = arith.constant 0 : i32
    %c0_i32_0 = arith.constant 0 : i32
    return %arg0, %c0_i32 : i32, i32
  }
  func.func @transform_1(%arg0: i32) -> (i32, i32) {
    %c0_i32 = arith.constant 0 : i32
    %c0_i32_0 = arith.constant 0 : i32
    %c0_i32_1 = arith.constant 0 : i32
    return %c0_i32, %c0_i32_0 : i32, i32
  }
  func.func @transform_2(%arg0: i32) -> (i32, i32) {
    %c0_i32 = arith.constant 0 : i32
    %c0_i32_0 = arith.constant 0 : i32
    return %arg0, %c0_i32 : i32, i32
  }
}

</mosaic_0001>

<llo_original>
// kernel: tpu_custom_call.1
$region0: #{tpu_custom_call.1}
  #allocation0 [shape = 'u32[]', space=smem, size = 0x4, offset = 0x4, fixed_abs, tag = 'smem constant byte address 0x4 - core index']
  #allocation1 [shape = 'u32[144,128]{1,0:T(1,128)}', space=vmem, size = 0x12000, scoped, tag = 'internal scratch']
  %s0 = inlined_call_operand.hbm [shape: f32[2,784], index: 0, kind: input, shape index: {}]
  %s1 = inlined_call_operand.hbm [shape: f32[784,128], index: 1, kind: input, shape index: {}]
  %s2 = inlined_call_operand.hbm [shape: f32[2,10], index: 2, kind: output, shape index: {}]
  %s3 = sld [smem:[#allocation0]]
  $region26: #{tpu_custom_call.1} parent=0
    _
  %s5 = ssub.s32 1, %s3
  %s6 = scalar_select 0, %s5, %s3
  $region1: #{tpu_custom_call.1} parent=0
    #allocation2 [shape = 'u8[7168]{0}', space=vmem, size = 0x1c00, scoped, tag = 'input window, operand 0, single buffered']
    #allocation3 [shape = 's32[1]{0}', space=sflag, size = 0x4, scoped, tag = 'scoped memory for tpu_custom_call.1']
    #allocation4 [shape = 's32[1]{0}', space=sflag, size = 0x4, scoped, tag = 'scoped memory for tpu_custom_call.1']
    #allocation5 [shape = 'u8[401408]{0}', space=vmem, size = 0x62000, scoped, tag = 'input window, operand 1, single buffered']
    #allocation6 [shape = 's32[1]{0}', space=sflag, size = 0x4, scoped, tag = 'scoped memory for tpu_custom_call.1']
    #allocation7 [shape = 'u8[1024]{0}', space=vmem, size = 0x400, scoped, tag = 'output window, operand 0, single buffered']
    %7 = vsyncpa [#allocation3], 0
    %8 = vsyncpa [#allocation6], 0
    %9 = vsyncpa [#allocation4], 0
    // Predicated region
    $region2: #{tpu_custom_call.1} parent=1 // pred_check
      _
    $region3: #{tpu_custom_call.1} parent=1 // pred_check_branch
      %11 = sbr.rel (0) target = $region5
    $region4: #{tpu_custom_call.1} parent=1 // pred_region
      %s13 = ssub.s32 224, 224
      %14 = vsyncadd [#allocation3], %s13
      %s16 = sshll.u32 [#allocation2], 4
      %s17 = int_to_ptr.vmem [resolvable:$true] %s16
      %19 = dma.hbm_to_vmem [thread:$0]  %s0, 224, %s17, [#allocation3]
    $region5: #{tpu_custom_call.1} parent=1 // pred_fallthru
      _
    // Predicated region
    $region6: #{tpu_custom_call.1} parent=1 // pred_check
      _
    $region7: #{tpu_custom_call.1} parent=1 // pred_check_branch
      %21 = sbr.rel (0) target = $region9
    $region8: #{tpu_custom_call.1} parent=1 // pred_region
      %s23 = ssub.s32 12544, 12544
      %24 = vsyncadd [#allocation6], %s23
      %s25 = sshll.u32 [#allocation5], 4
      %s26 = int_to_ptr.vmem [resolvable:$true] %s25
      %31 = dma.hbm_to_vmem [thread:$0]  %s1, 12544, %s26, [#allocation6], 128, 128, 8
    $region9: #{tpu_custom_call.1} parent=1 // pred_fallthru
      _
    // Predicated region
    $region10: #{tpu_custom_call.1} parent=1 // pred_check
      _
    $region11: #{tpu_custom_call.1} parent=1 // pred_check_branch
      %33 = sbr.rel (0) target = $region13
    $region12: #{tpu_custom_call.1} parent=1 // pred_region
      %34 = dma.done [#allocation3], 224
    $region13: #{tpu_custom_call.1} parent=1 // pred_fallthru
      _
    // Predicated region
    $region14: #{tpu_custom_call.1} parent=1 // pred_check
      _
    $region15: #{tpu_custom_call.1} parent=1 // pred_check_branch
      %36 = sbr.rel (0) target = $region17
    $region16: #{tpu_custom_call.1} parent=1 // pred_region
      %37 = dma.done [#allocation6], 12544
    $region17: #{tpu_custom_call.1} parent=1 // pred_fallthru
      _
    %v38 = vld [vmem:[#allocation2] sm:$0xff]
    %v39 = vld [vmem:[#allocation2 + $0x8] sm:$0x3f]
    %v40 = vld [vmem:[#allocation5] sm:$0xff]
    %v41 = vld [vmem:[#allocation5 + $0x8] sm:$0xff]
    %v42 = vld [vmem:[#allocation5 + $0x10] sm:$0xff]
    %v43 = vld [vmem:[#allocation5 + $0x18] sm:$0xff]
    %v44 = vld [vmem:[#allocation5 + $0x20] sm:$0xff]
    %v45 = vld [vmem:[#allocation5 + $0x28] sm:$0xff]
    %v46 = vld [vmem:[#allocation5 + $0x30] sm:$0xff]
    %v47 = vld [vmem:[#allocation5 + $0x38] sm:$0xff]
    %v48 = vld [vmem:[#allocation5 + $0x40] sm:$0xff]
    %v49 = vld [vmem:[#allocation5 + $0x48] sm:$0xff]
    %v50 = vld [vmem:[#allocation5 + $0x50] sm:$0xff]
    %v51 = vld [vmem:[#allocation5 + $0x58] sm:$0xff]
    %v52 = vld [vmem:[#allocation5 + $0x60] sm:$0xff]
    %v53 = vld [vmem:[#allocation5 + $0x68] sm:$0xff]
    %v54 = vld [vmem:[#allocation5 + $0x70] sm:$0xff]
    %v55 = vld [vmem:[#allocation5 + $0x78] sm:$0xff]
    %v56 = vld [vmem:[#allocation5 + $0x80] sm:$0xff]
    %v57 = vld [vmem:[#allocation5 + $0x88] sm:$0xff]
    %v58 = vld [vmem:[#allocation5 + $0x90] sm:$0xff]
    %v59 = vld [vmem:[#allocation5 + $0x98] sm:$0xff]
    %v60 = vld [vmem:[#allocation5 + $0xa0] sm:$0xff]
    %v61 = vld [vmem:[#allocation5 + $0xa8] sm:$0xff]
    %v62 = vld [vmem:[#allocation5 + $0xb0] sm:$0xff]
    %v63 = vld [vmem:[#allocation5 + $0xb8] sm:$0xff]
    %v64 = vld [vmem:[#allocation5 + $0xc0] sm:$0xff]
    %v65 = vld [vmem:[#allocation5 + $0xc8] sm:$0xff]
    %v66 = vld [vmem:[#allocation5 + $0xd0] sm:$0xff]
    %v67 = vld [vmem:[#allocation5 + $0xd8] sm:$0xff]
    %v68 = vld [vmem:[#allocation5 + $0xe0] sm:$0xff]
    %v69 = vld [vmem:[#allocation5 + $0xe8] sm:$0xff]
    %v70 = vld [vmem:[#allocation5 + $0xf0] sm:$0xff]
    %v71 = vld [vmem:[#allocation5 + $0xf8] sm:$0xff]
    %v72 = vld [vmem:[#allocation5 + $0x100] sm:$0xff]
    %v73 = vld [vmem:[#allocation5 + $0x108] sm:$0xff]
    %v74 = vld [vmem:[#allocation5 + $0x110] sm:$0xff]
    %v75 = vld [vmem:[#allocation5 + $0x118] sm:$0xff]
    %v76 = vld [vmem:[#allocation5 + $0x120] sm:$0xff]
    %v77 = vld [vmem:[#allocation5 + $0x128] sm:$0xff]
    %v78 = vld [vmem:[#allocation5 + $0x130] sm:$0xff]
    %v79 = vld [vmem:[#allocation5 + $0x138] sm:$0xff]
    %v80 = vld [vmem:[#allocation5 + $0x140] sm:$0xff]
    %v81 = vld [vmem:[#allocation5 + $0x148] sm:$0xff]
    %v82 = vld [vmem:[#allocation5 + $0x150] sm:$0xff]
    %v83 = vld [vmem:[#allocation5 + $0x158] sm:$0xff]
    %v84 = vld [vmem:[#allocation5 + $0x160] sm:$0xff]
    %v85 = vld [vmem:[#allocation5 + $0x168] sm:$0xff]
    %v86 = vld [vmem:[#allocation5 + $0x170] sm:$0xff]
    %v87 = vld [vmem:[#allocation5 + $0x178] sm:$0xff]
    %v88 = vld [vmem:[#allocation5 + $0x180] sm:$0xff]
    %v89 = vld [vmem:[#allocation5 + $0x188] sm:$0xff]
    %v90 = vld [vmem:[#allocation5 + $0x190] sm:$0xff]
    %v91 = vld [vmem:[#allocation5 + $0x198] sm:$0xff]
    %v92 = vld [vmem:[#allocation5 + $0x1a0] sm:$0xff]
    %v93 = vld [vmem:[#allocation5 + $0x1a8] sm:$0xff]
    %v94 = vld [vmem:[#allocation5 + $0x1b0] sm:$0xff]
    %v95 = vld [vmem:[#allocation5 + $0x1b8] sm:$0xff]
    %v96 = vld [vmem:[#allocation5 + $0x1c0] sm:$0xff]
    %v97 = vld [vmem:[#allocation5 + $0x1c8] sm:$0xff]
    %v98 = vld [vmem:[#allocation5 + $0x1d0] sm:$0xff]
    %v99 = vld [vmem:[#allocation5 + $0x1d8] sm:$0xff]
    %v100 = vld [vmem:[#allocation5 + $0x1e0] sm:$0xff]
    %v101 = vld [vmem:[#allocation5 + $0x1e8] sm:$0xff]
    %v102 = vld [vmem:[#allocation5 + $0x1f0] sm:$0xff]
    %v103 = vld [vmem:[#allocation5 + $0x1f8] sm:$0xff]
    %v104 = vld [vmem:[#allocation5 + $0x200] sm:$0xff]
    %v105 = vld [vmem:[#allocation5 + $0x208] sm:$0xff]
    %v106 = vld [vmem:[#allocation5 + $0x210] sm:$0xff]
    %v107 = vld [vmem:[#allocation5 + $0x218] sm:$0xff]
    %v108 = vld [vmem:[#allocation5 + $0x220] sm:$0xff]
    %v109 = vld [vmem:[#allocation5 + $0x228] sm:$0xff]
    %v110 = vld [vmem:[#allocation5 + $0x230] sm:$0xff]
    %v111 = vld [vmem:[#allocation5 + $0x238] sm:$0xff]
    %v112 = vld [vmem:[#allocation5 + $0x240] sm:$0xff]
    %v113 = vld [vmem:[#allocation5 + $0x248] sm:$0xff]
    %v114 = vld [vmem:[#allocation5 + $0x250] sm:$0xff]
    %v115 = vld [vmem:[#allocation5 + $0x258] sm:$0xff]
    %v116 = vld [vmem:[#allocation5 + $0x260] sm:$0xff]
    %v117 = vld [vmem:[#allocation5 + $0x268] sm:$0xff]
    %v118 = vld [vmem:[#allocation5 + $0x270] sm:$0xff]
    %v119 = vld [vmem:[#allocation5 + $0x278] sm:$0xff]
    %v120 = vld [vmem:[#allocation5 + $0x280] sm:$0xff]
    %v121 = vld [vmem:[#allocation5 + $0x288] sm:$0xff]
    %v122 = vld [vmem:[#allocation5 + $0x290] sm:$0xff]
    %v123 = vld [vmem:[#allocation5 + $0x298] sm:$0xff]
    %v124 = vld [vmem:[#allocation5 + $0x2a0] sm:$0xff]
    %v125 = vld [vmem:[#allocation5 + $0x2a8] sm:$0xff]
    %v126 = vld [vmem:[#allocation5 + $0x2b0] sm:$0xff]
    %v127 = vld [vmem:[#allocation5 + $0x2b8] sm:$0xff]
    %v128 = vld [vmem:[#allocation5 + $0x2c0] sm:$0xff]
    %v129 = vld [vmem:[#allocation5 + $0x2c8] sm:$0xff]
    %v130 = vld [vmem:[#allocation5 + $0x2d0] sm:$0xff]
    %v131 = vld [vmem:[#allocation5 + $0x2d8] sm:$0xff]
    %v132 = vld [vmem:[#allocation5 + $0x2e0] sm:$0xff]
    %v133 = vld [vmem:[#allocation5 + $0x2e8] sm:$0xff]
    %v134 = vld [vmem:[#allocation5 + $0x2f0] sm:$0xff]
    %v135 = vld [vmem:[#allocation5 + $0x2f8] sm:$0xff]
    %v136 = vld [vmem:[#allocation5 + $0x300] sm:$0xff]
    %v137 = vld [vmem:[#allocation5 + $0x308] sm:$0xff]
    %v140 = vcombine.high %v38, %v38
    %v142 = vunpack.c.l.s4 1983009808
    %v143 = vunpack.c.0.s8 %v142
    %v144 = vlaneseq
    %v145 = vshrl.u32 %v144, 7
    %v146 = vsub.s32 %v143, %v145
    %v147 = vrot.slane %v38, %v146
    %v149 = vunpack.c.l.s4 1983009808
    %v150 = vunpack.c.0.s8 %v149
    %v151 = vlaneseq
    %v152 = vshrl.u32 %v151, 7
    %v153 = vsub.s32 %v150, %v152
    %v154 = vrot.slane %v140, %v153
    %v155 = vcombine.high %v147, %v147
    %v156 = vcombine.high %v154, %v154
    %v157 = vcombine.high %v39, %v39
    %v159 = vunpack.c.l.s4 1983009808
    %v160 = vunpack.c.0.s8 %v159
    %v161 = vlaneseq
    %v162 = vshrl.u32 %v161, 7
    %v163 = vsub.s32 %v160, %v162
    %v164 = vrot.slane %v39, %v163
    %v166 = vunpack.c.l.s4 1983009808
    %v167 = vunpack.c.0.s8 %v166
    %v168 = vlaneseq
    %v169 = vshrl.u32 %v168, 7
    %v170 = vsub.s32 %v167, %v169
    %v171 = vrot.slane %v157, %v170
    %v172 = vcombine.high %v164, %v164
    %vm179 = vcmask 130048
    %v180 = vsel %vm179, %v171, 0
    %182 = vmatprep.subr.mxu0 0.0
    %183 = vmatpush1.msra.mxu0 %v40
    %184 = vmatprep.subr.mxu0 0.0
    %185 = vmatpush1.msra.mxu0 %v41
    %186 = vmatprep.subr.mxu0 0.0
    %187 = vmatpush1.msra.mxu0 %v42
    %188 = vmatprep.subr.mxu0 0.0
    %189 = vmatpush1.msra.mxu0 %v43
    %190 = vmatprep.subr.mxu0 0.0
    %191 = vmatpush1.msra.mxu0 %v44
    %192 = vmatprep.subr.mxu0 0.0
    %193 = vmatpush1.msra.mxu0 %v45
    %194 = vmatprep.subr.mxu0 0.0
    %195 = vmatpush1.msra.mxu0 %v46
    %196 = vmatprep.subr.mxu0 0.0
    %197 = vmatpush1.msra.mxu0 %v47
    %198 = vmatprep.subr.mxu0 0.0
    %199 = vmatpush1.msra.mxu0 %v48
    %200 = vmatprep.subr.mxu0 0.0
    %201 = vmatpush1.msra.mxu0 %v49
    %202 = vmatprep.subr.mxu0 0.0
    %203 = vmatpush1.msra.mxu0 %v50
    %204 = vmatprep.subr.mxu0 0.0
    %205 = vmatpush1.msra.mxu0 %v51
    %206 = vmatprep.subr.mxu0 0.0
    %207 = vmatpush1.msra.mxu0 %v52
    %208 = vmatprep.subr.mxu0 0.0
    %209 = vmatpush1.msra.mxu0 %v53
    %210 = vmatprep.subr.mxu0 0.0
    %211 = vmatpush1.msra.mxu0 %v54
    %212 = vmatprep.subr.mxu0 0.0
    %213 = vmatpush1.msra.mxu0 %v55
    %214 = vmatprep.subr.mxu0 0.0
    %215 = vmatpush1.msra.mxu0 %v56
    %216 = vmatprep.subr.mxu0 0.0
    %217 = vmatpush1.msra.mxu0 %v57
    %218 = vmatprep.subr.mxu0 0.0
    %219 = vmatpush1.msra.mxu0 %v58
    %220 = vmatprep.subr.mxu0 0.0
    %221 = vmatpush1.msra.mxu0 %v59
    %222 = vmatprep.subr.mxu0 0.0
    %223 = vmatpush1.msra.mxu0 %v60
    %224 = vmatprep.subr.mxu0 0.0
    %225 = vmatpush1.msra.mxu0 %v61
    %226 = vmatprep.subr.mxu0 0.0
    %227 = vmatpush1.msra.mxu0 %v62
    %228 = vmatprep.subr.mxu0 0.0
    %229 = vmatpush1.msra.mxu0 %v63
    %230 = vmatprep.subr.mxu0 0.0
    %231 = vmatpush1.msra.mxu0 %v64
    %232 = vmatprep.subr.mxu0 0.0
    %233 = vmatpush1.msra.mxu0 %v65
    %234 = vmatprep.subr.mxu0 0.0
    %235 = vmatpush1.msra.mxu0 %v66
    %236 = vmatprep.subr.mxu0 0.0
    %237 = vmatpush1.msra.mxu0 %v67
    %238 = vmatprep.subr.mxu0 0.0
    %239 = vmatpush1.msra.mxu0 %v68
    %240 = vmatprep.subr.mxu0 0.0
    %241 = vmatpush1.msra.mxu0 %v69
    %242 = vmatprep.subr.mxu0 0.0
    %243 = vmatpush1.msra.mxu0 %v70
    %244 = vmatprep.subr.mxu0 0.0
    %245 = vmatpush1.msra.mxu0 %v71
    %246 = vmatprep.mubr.f32.mxu0 %v155
    %247 = vmatmul.mubr.f32.gmra.mrb[0].mxu0 %v147
    %v248 = vpop.f32.mrb[0].mxu0
    %v249 = vadd.f32 0.0, %v248
    %v250 = vpop.f32.mrb[0].mxu0
    %251 = vdwg.mxu0
    %252 = vmatprep.subr.mxu0 0.0
    %253 = vmatpush1.msra.mxu0 %v72
    %254 = vmatprep.subr.mxu0 0.0
    %255 = vmatpush1.msra.mxu0 %v73
    %256 = vmatprep.subr.mxu0 0.0
    %257 = vmatpush1.msra.mxu0 %v74
    %258 = vmatprep.subr.mxu0 0.0
    %259 = vmatpush1.msra.mxu0 %v75
    %260 = vmatprep.subr.mxu0 0.0
    %261 = vmatpush1.msra.mxu0 %v76
    %262 = vmatprep.subr.mxu0 0.0
    %263 = vmatpush1.msra.mxu0 %v77
    %264 = vmatprep.subr.mxu0 0.0
    %265 = vmatpush1.msra.mxu0 %v78
    %266 = vmatprep.subr.mxu0 0.0
    %267 = vmatpush1.msra.mxu0 %v79
    %268 = vmatprep.subr.mxu0 0.0
    %269 = vmatpush1.msra.mxu0 %v80
    %270 = vmatprep.subr.mxu0 0.0
    %271 = vmatpush1.msra.mxu0 %v81
    %272 = vmatprep.subr.mxu0 0.0
    %273 = vmatpush1.msra.mxu0 %v82
    %274 = vmatprep.subr.mxu0 0.0
    %275 = vmatpush1.msra.mxu0 %v83
    %276 = vmatprep.subr.mxu0 0.0
    %277 = vmatpush1.msra.mxu0 %v84
    %278 = vmatprep.subr.mxu0 0.0
    %279 = vmatpush1.msra.mxu0 %v85
    %280 = vmatprep.subr.mxu0 0.0
    %281 = vmatpush1.msra.mxu0 %v86
    %282 = vmatprep.subr.mxu0 0.0
    %283 = vmatpush1.msra.mxu0 %v87
    %284 = vmatprep.subr.mxu0 0.0
    %285 = vmatpush1.msra.mxu0 %v88
    %286 = vmatprep.subr.mxu0 0.0
    %287 = vmatpush1.msra.mxu0 %v89
    %288 = vmatprep.subr.mxu0 0.0
    %289 = vmatpush1.msra.mxu0 %v90
    %290 = vmatprep.subr.mxu0 0.0
    %291 = vmatpush1.msra.mxu0 %v91
    %292 = vmatprep.subr.mxu0 0.0
    %293 = vmatpush1.msra.mxu0 %v92
    %294 = vmatprep.subr.mxu0 0.0
    %295 = vmatpush1.msra.mxu0 %v93
    %296 = vmatprep.subr.mxu0 0.0
    %297 = vmatpush1.msra.mxu0 %v94
    %298 = vmatprep.subr.mxu0 0.0
    %299 = vmatpush1.msra.mxu0 %v95
    %300 = vmatprep.subr.mxu0 0.0
    %301 = vmatpush1.msra.mxu0 %v96
    %302 = vmatprep.subr.mxu0 0.0
    %303 = vmatpush1.msra.mxu0 %v97
    %304 = vmatprep.subr.mxu0 0.0
    %305 = vmatpush1.msra.mxu0 %v98
    %306 = vmatprep.subr.mxu0 0.0
    %307 = vmatpush1.msra.mxu0 %v99
    %308 = vmatprep.subr.mxu0 0.0
    %309 = vmatpush1.msra.mxu0 %v100
    %310 = vmatprep.subr.mxu0 0.0
    %311 = vmatpush1.msra.mxu0 %v101
    %312 = vmatprep.subr.mxu0 0.0
    %313 = vmatpush1.msra.mxu0 %v102
    %314 = vmatprep.subr.mxu0 0.0
    %315 = vmatpush1.msra.mxu0 %v103
    %316 = vmatprep.mubr.f32.mxu0 %v156
    %317 = vmatmul.mubr.f32.gmra.mrb[0].mxu0 %v154
    %v318 = vpop.f32.mrb[0].mxu0
    %v319 = vadd.f32 %v249, %v318
    %v320 = vpop.f32.mrb[0].mxu0
    %321 = vdwg.mxu0
    %322 = vmatprep.subr.mxu0 0.0
    %323 = vmatpush1.msra.mxu0 %v104
    %324 = vmatprep.subr.mxu0 0.0
    %325 = vmatpush1.msra.mxu0 %v105
    %326 = vmatprep.subr.mxu0 0.0
    %327 = vmatpush1.msra.mxu0 %v106
    %328 = vmatprep.subr.mxu0 0.0
    %329 = vmatpush1.msra.mxu0 %v107
    %330 = vmatprep.subr.mxu0 0.0
    %331 = vmatpush1.msra.mxu0 %v108
    %332 = vmatprep.subr.mxu0 0.0
    %333 = vmatpush1.msra.mxu0 %v109
    %334 = vmatprep.subr.mxu0 0.0
    %335 = vmatpush1.msra.mxu0 %v110
    %336 = vmatprep.subr.mxu0 0.0
    %337 = vmatpush1.msra.mxu0 %v111
    %338 = vmatprep.subr.mxu0 0.0
    %339 = vmatpush1.msra.mxu0 %v112
    %340 = vmatprep.subr.mxu0 0.0
    %341 = vmatpush1.msra.mxu0 %v113
    %342 = vmatprep.subr.mxu0 0.0
    %343 = vmatpush1.msra.mxu0 %v114
    %344 = vmatprep.subr.mxu0 0.0
    %345 = vmatpush1.msra.mxu0 %v115
    %346 = vmatprep.subr.mxu0 0.0
    %347 = vmatpush1.msra.mxu0 %v116
    %348 = vmatprep.subr.mxu0 0.0
    %349 = vmatpush1.msra.mxu0 %v117
    %350 = vmatprep.subr.mxu0 0.0
    %351 = vmatpush1.msra.mxu0 %v118
    %352 = vmatprep.subr.mxu0 0.0
    %353 = vmatpush1.msra.mxu0 %v119
    %354 = vmatprep.subr.mxu0 0.0
    %355 = vmatpush1.msra.mxu0 %v120
    %356 = vmatprep.subr.mxu0 0.0
    %357 = vmatpush1.msra.mxu0 %v121
    %358 = vmatprep.subr.mxu0 0.0
    %359 = vmatpush1.msra.mxu0 %v122
    %360 = vmatprep.subr.mxu0 0.0
    %361 = vmatpush1.msra.mxu0 %v123
    %362 = vmatprep.subr.mxu0 0.0
    %363 = vmatpush1.msra.mxu0 %v124
    %364 = vmatprep.subr.mxu0 0.0
    %365 = vmatpush1.msra.mxu0 %v125
    %366 = vmatprep.subr.mxu0 0.0
    %367 = vmatpush1.msra.mxu0 %v126
    %368 = vmatprep.subr.mxu0 0.0
    %369 = vmatpush1.msra.mxu0 %v127
    %370 = vmatprep.subr.mxu0 0.0
    %371 = vmatpush1.msra.mxu0 %v128
    %372 = vmatprep.subr.mxu0 0.0
    %373 = vmatpush1.msra.mxu0 %v129
    %374 = vmatprep.subr.mxu0 0.0
    %375 = vmatpush1.msra.mxu0 %v130
    %376 = vmatprep.subr.mxu0 0.0
    %377 = vmatpush1.msra.mxu0 %v131
    %378 = vmatprep.subr.mxu0 0.0
    %379 = vmatpush1.msra.mxu0 %v132
    %380 = vmatprep.subr.mxu0 0.0
    %381 = vmatpush1.msra.mxu0 %v133
    %382 = vmatprep.subr.mxu0 0.0
    %383 = vmatpush1.msra.mxu0 %v134
    %384 = vmatprep.subr.mxu0 0.0
    %385 = vmatpush1.msra.mxu0 %v135
    %386 = vmatprep.mubr.f32.mxu0 %v172
    %387 = vmatmul.mubr.f32.gmra.mrb[0].mxu0 %v164
    %v388 = vpop.f32.mrb[0].mxu0
    %v389 = vadd.f32 %v319, %v388
    %v390 = vpop.f32.mrb[0].mxu0
    %391 = vdwg.mxu0
    %392 = vmatprep.subr.mxu0 0.0
    %393 = vmatpush1.msra.mxu0 %v136
    %394 = vmatprep.subr.mxu0 0.0
    %395 = vmatpush1.msra.mxu0 %v137
    %396 = vmatprep.subr.mxu0 0.0
    %397 = vmatpush1.msra.mxu0 0.0
    %398 = vmatprep.subr.mxu0 0.0
    %399 = vmatpush1.msra.mxu0 0.0
    %400 = vmatprep.subr.mxu0 0.0
    %401 = vmatpush1.msra.mxu0 0.0
    %402 = vmatprep.subr.mxu0 0.0
    %403 = vmatpush1.msra.mxu0 0.0
    %404 = vmatprep.subr.mxu0 0.0
    %405 = vmatpush1.msra.mxu0 0.0
    %406 = vmatprep.subr.mxu0 0.0
    %407 = vmatpush1.msra.mxu0 0.0
    %408 = vmatprep.subr.mxu0 0.0
    %409 = vmatpush1.msra.mxu0 0.0
    %410 = vmatprep.subr.mxu0 0.0
    %411 = vmatpush1.msra.mxu0 0.0
    %412 = vmatprep.subr.mxu0 0.0
    %413 = vmatpush1.msra.mxu0 0.0
    %414 = vmatprep.subr.mxu0 0.0
    %415 = vmatpush1.msra.mxu0 0.0
    %416 = vmatprep.subr.mxu0 0.0
    %417 = vmatpush1.msra.mxu0 0.0
    %418 = vmatprep.subr.mxu0 0.0
    %419 = vmatpush1.msra.mxu0 0.0
    %420 = vmatprep.subr.mxu0 0.0
    %421 = vmatpush1.msra.mxu0 0.0
    %422 = vmatprep.subr.mxu0 0.0
    %423 = vmatpush1.msra.mxu0 0.0
    %424 = vmatprep.subr.mxu0 0.0
    %425 = vmatpush1.msra.mxu0 0.0
    %426 = vmatprep.subr.mxu0 0.0
    %427 = vmatpush1.msra.mxu0 0.0
    %428 = vmatprep.subr.mxu0 0.0
    %429 = vmatpush1.msra.mxu0 0.0
    %430 = vmatprep.subr.mxu0 0.0
    %431 = vmatpush1.msra.mxu0 0.0
    %432 = vmatprep.subr.mxu0 0.0
    %433 = vmatpush1.msra.mxu0 0.0
    %434 = vmatprep.subr.mxu0 0.0
    %435 = vmatpush1.msra.mxu0 0.0
    %436 = vmatprep.subr.mxu0 0.0
    %437 = vmatpush1.msra.mxu0 0.0
    %438 = vmatprep.subr.mxu0 0.0
    %439 = vmatpush1.msra.mxu0 0.0
    %440 = vmatprep.subr.mxu0 0.0
    %441 = vmatpush1.msra.mxu0 0.0
    %442 = vmatprep.subr.mxu0 0.0
    %443 = vmatpush1.msra.mxu0 0.0
    %444 = vmatprep.subr.mxu0 0.0
    %445 = vmatpush1.msra.mxu0 0.0
    %446 = vmatprep.subr.mxu0 0.0
    %447 = vmatpush1.msra.mxu0 0.0
    %448 = vmatprep.subr.mxu0 0.0
    %449 = vmatpush1.msra.mxu0 0.0
    %450 = vmatprep.subr.mxu0 0.0
    %451 = vmatpush1.msra.mxu0 0.0
    %452 = vmatprep.subr.mxu0 0.0
    %453 = vmatpush1.msra.mxu0 0.0
    %454 = vmatprep.subr.mxu0 0.0
    %455 = vmatpush1.msra.mxu0 0.0
    %456 = vmatprep.mubr.f32.mxu0 0.0
    %457 = vmatmul.mubr.f32.gmra.mrb[0].mxu0 %v180
    %v458 = vpop.f32.mrb[0].mxu0
    %v459 = vadd.f32 %v389, %v458
    %v460 = vpop.f32.mrb[0].mxu0
    %461 = vdwg.mxu0
    %vm462 = vcmask 74752
    %463 = vst.msk [vmem:[#allocation7] sm:$0x3] %vm462, %v459
    // Predicated region
    $region18: #{tpu_custom_call.1} parent=1 // pred_check
      _
    $region19: #{tpu_custom_call.1} parent=1 // pred_check_branch
      %465 = sbr.rel (0) target = $region21
    $region20: #{tpu_custom_call.1} parent=1 // pred_region
      %s467 = ssub.s32 32, 32
      %468 = vsyncadd [#allocation4], %s467
      %s470 = sshll.u32 [#allocation7], 4
      %s471 = int_to_ptr.vmem [resolvable:$true] %s470
      %473 = dma.vmem_to_hbm [thread:$0]  %s471, 32, %s2, [#allocation4]
    $region21: #{tpu_custom_call.1} parent=1 // pred_fallthru
      _
    // Predicated region
    $region22: #{tpu_custom_call.1} parent=1 // pred_check
      _
    $region23: #{tpu_custom_call.1} parent=1 // pred_check_branch
      %475 = sbr.rel (0) target = $region25
    $region24: #{tpu_custom_call.1} parent=1 // pred_region
      %476 = dma.done [#allocation4], 32
    $region25: #{tpu_custom_call.1} parent=1 // pred_fallthru
      _
    %477 = vsyncpa [#allocation3], 1
    %478 = vsyncpa [#allocation6], 1
    %479 = vsyncpa [#allocation4], 1

</llo_original>
